<compile_context>
chip_gen: v5e
topology: v5e:2x2
jax: 0.10.0
libtpu: 0.0.40
codegen_flags: <defaults>
</compile_context>

<pallas_src>
import jax
import jax.numpy as jnp
import numpy as np
from jax import lax
from jax.experimental import pallas as pl
from jax.experimental.pallas import tpu as pltpu


def _patch_merging_kernel(x_ref, w_ref, b_ref, o_ref):
    # x_ref: (1, tile_c, Ho, 2*W)   row-pair-concatenated input block
    # w_ref: (tile_c, 1, 8)         w[c, 0, 4*k + 2*kh + kw]
    # b_ref: (tile_c, 1, 2)         b[c, 0, k]
    # o_ref: (1, tile_c, 2, Ho, Wo) output, channel o = 2*c + k
    tile_c, ho, w2 = x_ref.shape[1], x_ref.shape[2], x_ref.shape[3]
    w_full = w2 // 2
    wo = w_full // 2

    xb = x_ref[0].astype(jnp.float32)        # (tile_c, Ho, 2W)
    top = xb[:, :, :w_full]                  # input rows 2i   (kh = 0)
    bot = xb[:, :, w_full:]                  # input rows 2i+1 (kh = 1)

    # 0/1 decimation matrices: d_kw[j, w] = 1 iff w == 2*j + kw.
    j_ids = lax.broadcasted_iota(jnp.int32, (wo, w_full), 0)
    w_ids = lax.broadcasted_iota(jnp.int32, (wo, w_full), 1)
    d0 = (w_ids == 2 * j_ids).astype(jnp.float32)
    d1 = (w_ids == 2 * j_ids + 1).astype(jnp.float32)
    d0b = jnp.broadcast_to(d0[None], (tile_c, wo, w_full))
    d1b = jnp.broadcast_to(d1[None], (tile_c, wo, w_full))

    # Batched matmul (batch = channel, contract over w): pure lane decimation.
    dn = (((2,), (2,)), ((0,), (0,)))
    taps = []
    for half in (top, bot):                  # kh = 0, 1
        for db in (d0b, d1b):                # kw = 0, 1
            taps.append(lax.dot_general(half, db, dimension_numbers=dn,
                                        preferred_element_type=jnp.float32))
    # taps[t][c, i, j] == x[c, 2i+kh, 2j+kw] for t = 2*kh + kw

    wv = w_ref[...].astype(jnp.float32)      # (tile_c, 1, 8)
    bv = b_ref[...].astype(jnp.float32)      # (tile_c, 1, 2)
    for k in range(2):                       # 2 output channels per group (VPU)
        out_k = (wv[:, :, 4 * k + 0:4 * k + 1] * taps[0]
                 + wv[:, :, 4 * k + 1:4 * k + 2] * taps[1]
                 + wv[:, :, 4 * k + 2:4 * k + 3] * taps[2]
                 + wv[:, :, 4 * k + 3:4 * k + 4] * taps[3]
                 + bv[:, :, k:k + 1])        # (tile_c,1,1) broadcasts over (Ho,Wo)
        o_ref[0, :, k, :, :] = out_k.astype(o_ref.dtype)


def patch_merging(x, weight, bias, *, tile_c=None, vmem_budget_bytes=512 * 1024):
    """x: (N, C, H, W) NCHW; weight: (2C, 1, 2, 2) OIHW; bias: (2C,)."""
    N, C, H, W = x.shape
    Ho, Wo = H // 2, W // 2
    # VALID stride-2 conv drops a trailing odd row/col (no-op slice when even).
    x = x[:, :, :2 * Ho, :2 * Wo]
    W2 = 4 * Wo                               # two width-2Wo rows concatenated

    # Zero-cost view: each 2-row pair concatenated along the lane dim.
    xv = x.reshape(N, C, Ho, W2)

    # Compact per-channel parameters (blocked by channel tile in the kernel).
    w_in = weight.reshape(C, 1, 8)            # [c, 0, 4*k + 2*kh + kw]
    b_in = bias.reshape(C, 1, 2)              # [c, 0, k]

    if tile_c is None:
        itemsize = x.dtype.itemsize
        tile_c = 1
        for d in range(1, C + 1):
            if C % d == 0 and d <= 128 and d * Ho * W2 * itemsize <= vmem_budget_bytes:
                tile_c = d

    grid = (N, C // tile_c)

    flops = 2 * 8 * N * C * Ho * Wo           # 4 MACs per output element
    bytes_accessed = ((x.size + 2 * N * C * Ho * Wo) * x.dtype.itemsize
                      + w_in.size * w_in.dtype.itemsize
                      + b_in.size * b_in.dtype.itemsize)

    out = pl.pallas_call(
        _patch_merging_kernel,
        out_shape=jax.ShapeDtypeStruct((N, C, 2, Ho, Wo), x.dtype),
        grid=grid,
        in_specs=[
            pl.BlockSpec((1, tile_c, Ho, W2), lambda n, cb: (n, cb, 0, 0)),
            pl.BlockSpec((tile_c, 1, 8), lambda n, cb: (cb, 0, 0)),
            pl.BlockSpec((tile_c, 1, 2), lambda n, cb: (cb, 0, 0)),
        ],
        out_specs=pl.BlockSpec((1, tile_c, 2, Ho, Wo),
                               lambda n, cb: (n, cb, 0, 0, 0)),
        compiler_params=pltpu.CompilerParams(
            dimension_semantics=("parallel", "parallel")),
        cost_estimate=pl.CostEstimate(flops=flops, transcendentals=0,
                                      bytes_accessed=bytes_accessed),
    )(xv, w_in, b_in)

    # Zero-cost: (N, C, 2, Ho, Wo) -> (N, 2C, Ho, Wo) with out channel o = 2*c + k.
    return out.reshape(N, 2 * C, Ho, Wo)


if __name__ == "__main__":
    key = jax.random.PRNGKey(0)
    kx, kwt, kbs = jax.random.split(key, 3)

    N, C, H, W = 2, 4, 16, 16
    x = jax.random.normal(kx, (N, C, H, W), dtype=jnp.float32)
    # nn.Conv2d(C, 2C, 2, stride=2, padding=0, groups=C): weight (2C,1,2,2), bias (2C,)
    weight = jax.random.normal(kwt, (2 * C, 1, 2, 2), dtype=jnp.float32) * 0.1
    bias = jax.random.normal(kbs, (2 * C,), dtype=jnp.float32) * 0.1

    out = jax.block_until_ready(patch_merging(x, weight, bias))

    # Pure-jnp reference of the grouped 2x2 / stride-2 conv.
    w4 = weight.reshape(2 * C, 2, 2)
    ref = jnp.zeros((N, 2 * C, H // 2, W // 2), jnp.float32)
    for kh in range(2):
        for kw_ in range(2):
            tap = x[:, :, kh::2, kw_::2]              # (N, C, Ho, Wo)
            tap = jnp.repeat(tap, 2, axis=1)          # output channel o reads c = o // 2
            ref = ref + w4[None, :, kh, kw_, None, None] * tap
    ref = ref + bias[None, :, None, None]

    assert out.shape == (N, 2 * C, H // 2, W // 2)
    np.testing.assert_allclose(np.asarray(out), np.asarray(ref), rtol=1e-5, atol=1e-5)
    print("KERNEL_OK")
</pallas_src>

<mosaic_0001>
module attributes {stable_mosaic.version = 11 : i64} {
  func.func @_patch_merging_kernel(%arg0: i32, %arg1: i32, %arg2: memref<1x4x8x32xf32, #tpu.memory_space<vmem>>, %arg3: memref<4x1x8xf32, #tpu.memory_space<vmem>>, %arg4: memref<4x1x2xf32, #tpu.memory_space<vmem>>, %arg5: memref<1x4x2x8x8xf32, #tpu.memory_space<vmem>>) attributes {dimension_semantics = [#tpu.dimension_semantics<parallel>, #tpu.dimension_semantics<parallel>], iteration_bounds = array<i64: 2, 1>, scalar_prefetch = 0 : i64, scratch_operands = 0 : i64, tpu.core_type = #tpu.core_type<tc>, window_params = [{transform_indices = @transform_0, window_bounds = array<i64: 1, 4, 8, 32>}, {transform_indices = @transform_1, window_bounds = array<i64: 4, 1, 8>}, {transform_indices = @transform_2, window_bounds = array<i64: 4, 1, 2>}, {transform_indices = @transform_3, window_bounds = array<i64: 1, 4, 2, 8, 8>}]} {
    %c0 = arith.constant 0 : index
    %c0_0 = arith.constant 0 : index
    %c0_1 = arith.constant 0 : index
    %c0_2 = arith.constant 0 : index
    %0 = vector.load %arg2[%c0, %c0_0, %c0_1, %c0_2] : memref<1x4x8x32xf32, #tpu.memory_space<vmem>>, vector<1x4x8x32xf32>
    %1 = vector.shape_cast %0 : vector<1x4x8x32xf32> to vector<4x8x32xf32>
    %2 = vector.extract_strided_slice %1 {offsets = [0, 0, 0], sizes = [4, 8, 16], strides = [1, 1, 1]} : vector<4x8x32xf32> to vector<4x8x16xf32>
    %3 = vector.extract_strided_slice %1 {offsets = [0, 0, 16], sizes = [4, 8, 16], strides = [1, 1, 1]} : vector<4x8x32xf32> to vector<4x8x16xf32>
    %4 = tpu.iota {dimensions = array<i32: 0>} : vector<8x16xi32>
    %5 = tpu.iota {dimensions = array<i32: 1>} : vector<8x16xi32>
    %c2_i32 = arith.constant 2 : i32
    %6 = vector.broadcast %c2_i32 : i32 to vector<8x16xi32>
    %7 = arith.muli %6, %4 : vector<8x16xi32>
    %8 = arith.cmpi eq, %5, %7 : vector<8x16xi32>
    %9 = arith.extui %8 : vector<8x16xi1> to vector<8x16xi32>
    %10 = arith.sitofp %9 : vector<8x16xi32> to vector<8x16xf32>
    %c2_i32_3 = arith.constant 2 : i32
    %11 = vector.broadcast %c2_i32_3 : i32 to vector<8x16xi32>
    %12 = arith.muli %11, %4 : vector<8x16xi32>
    %c1_i32 = arith.constant 1 : i32
    %13 = vector.broadcast %c1_i32 : i32 to vector<8x16xi32>
    %14 = arith.addi %12, %13 : vector<8x16xi32>
    %15 = arith.cmpi eq, %5, %14 : vector<8x16xi32>
    %16 = arith.extui %15 : vector<8x16xi1> to vector<8x16xi32>
    %17 = arith.sitofp %16 : vector<8x16xi32> to vector<8x16xf32>
    %18 = vector.shape_cast %10 : vector<8x16xf32> to vector<1x8x16xf32>
    %19 = vector.shape_cast %18 : vector<1x8x16xf32> to vector<1x8x16xf32>
    %20 = vector.broadcast %19 : vector<1x8x16xf32> to vector<4x8x16xf32>
    %21 = vector.shape_cast %17 : vector<8x16xf32> to vector<1x8x16xf32>
    %22 = vector.shape_cast %21 : vector<1x8x16xf32> to vector<1x8x16xf32>
    %23 = vector.broadcast %22 : vector<1x8x16xf32> to vector<4x8x16xf32>
    %cst = arith.constant dense<0.000000e+00> : vector<4x8x8xf32>
    %24 = tpu.matmul %2, %20, %cst {dimension_numbers = #tpu.dot_dimension_numbers<[2], [2], [1], [1], [0, 0, 0, 1, 1, 1], [0], [0]>} : vector<4x8x16xf32>, vector<4x8x16xf32>, vector<4x8x8xf32> -> vector<4x8x8xf32>
    %cst_4 = arith.constant dense<0.000000e+00> : vector<4x8x8xf32>
    %25 = tpu.matmul %2, %23, %cst_4 {dimension_numbers = #tpu.dot_dimension_numbers<[2], [2], [1], [1], [0, 0, 0, 1, 1, 1], [0], [0]>} : vector<4x8x16xf32>, vector<4x8x16xf32>, vector<4x8x8xf32> -> vector<4x8x8xf32>
    %cst_5 = arith.constant dense<0.000000e+00> : vector<4x8x8xf32>
    %26 = tpu.matmul %3, %20, %cst_5 {dimension_numbers = #tpu.dot_dimension_numbers<[2], [2], [1], [1], [0, 0, 0, 1, 1, 1], [0], [0]>} : vector<4x8x16xf32>, vector<4x8x16xf32>, vector<4x8x8xf32> -> vector<4x8x8xf32>
    %cst_6 = arith.constant dense<0.000000e+00> : vector<4x8x8xf32>
    %27 = tpu.matmul %3, %23, %cst_6 {dimension_numbers = #tpu.dot_dimension_numbers<[2], [2], [1], [1], [0, 0, 0, 1, 1, 1], [0], [0]>} : vector<4x8x16xf32>, vector<4x8x16xf32>, vector<4x8x8xf32> -> vector<4x8x8xf32>
    %c0_7 = arith.constant 0 : index
    %c0_8 = arith.constant 0 : index
    %c0_9 = arith.constant 0 : index
    %28 = vector.load %arg3[%c0_7, %c0_8, %c0_9] : memref<4x1x8xf32, #tpu.memory_space<vmem>>, vector<4x1x8xf32>
    %c0_10 = arith.constant 0 : index
    %c0_11 = arith.constant 0 : index
    %c0_12 = arith.constant 0 : index
    %29 = vector.load %arg4[%c0_10, %c0_11, %c0_12] : memref<4x1x2xf32, #tpu.memory_space<vmem>>, vector<4x1x2xf32>
    %30 = vector.extract_strided_slice %28 {offsets = [0, 0, 0], sizes = [4, 1, 1], strides = [1, 1, 1]} : vector<4x1x8xf32> to vector<4x1x1xf32>
    %31 = vector.broadcast %30 : vector<4x1x1xf32> to vector<4x8x8xf32>
    %32 = arith.mulf %31, %24 : vector<4x8x8xf32>
    %33 = vector.extract_strided_slice %28 {offsets = [0, 0, 1], sizes = [4, 1, 1], strides = [1, 1, 1]} : vector<4x1x8xf32> to vector<4x1x1xf32>
    %34 = vector.broadcast %33 : vector<4x1x1xf32> to vector<4x8x8xf32>
    %35 = arith.mulf %34, %25 : vector<4x8x8xf32>
    %36 = arith.addf %32, %35 : vector<4x8x8xf32>
    %37 = vector.extract_strided_slice %28 {offsets = [0, 0, 2], sizes = [4, 1, 1], strides = [1, 1, 1]} : vector<4x1x8xf32> to vector<4x1x1xf32>
    %38 = vector.broadcast %37 : vector<4x1x1xf32> to vector<4x8x8xf32>
    %39 = arith.mulf %38, %26 : vector<4x8x8xf32>
    %40 = arith.addf %36, %39 : vector<4x8x8xf32>
    %41 = vector.extract_strided_slice %28 {offsets = [0, 0, 3], sizes = [4, 1, 1], strides = [1, 1, 1]} : vector<4x1x8xf32> to vector<4x1x1xf32>
    %42 = vector.broadcast %41 : vector<4x1x1xf32> to vector<4x8x8xf32>
    %43 = arith.mulf %42, %27 : vector<4x8x8xf32>
    %44 = arith.addf %40, %43 : vector<4x8x8xf32>
    %45 = vector.extract_strided_slice %29 {offsets = [0, 0, 0], sizes = [4, 1, 1], strides = [1, 1, 1]} : vector<4x1x2xf32> to vector<4x1x1xf32>
    %46 = vector.broadcast %45 : vector<4x1x1xf32> to vector<4x8x8xf32>
    %47 = arith.addf %44, %46 : vector<4x8x8xf32>
    %c0_13 = arith.constant 0 : index
    %c0_14 = arith.constant 0 : index
    %c0_15 = arith.constant 0 : index
    %c0_16 = arith.constant 0 : index
    %c0_17 = arith.constant 0 : index
    %48 = vector.load %arg5[%c0_13, %c0_14, %c0_15, %c0_16, %c0_17] : memref<1x4x2x8x8xf32, #tpu.memory_space<vmem>>, vector<1x4x1x8x8xf32>
    %49 = vector.shape_cast %48 : vector<1x4x1x8x8xf32> to vector<4x8x8xf32>
    %50 = vector.shape_cast %47 : vector<4x8x8xf32> to vector<1x4x1x8x8xf32>
    tpu.vector_store %arg5[%c0_13, %c0_14, %c0_15, %c0_16, %c0_17], %50 {strides = array<i32>} : memref<1x4x2x8x8xf32, #tpu.memory_space<vmem>>, vector<1x4x1x8x8xf32>,
    %51 = vector.extract_strided_slice %28 {offsets = [0, 0, 4], sizes = [4, 1, 1], strides = [1, 1, 1]} : vector<4x1x8xf32> to vector<4x1x1xf32>
    %52 = vector.broadcast %51 : vector<4x1x1xf32> to vector<4x8x8xf32>
    %53 = arith.mulf %52, %24 : vector<4x8x8xf32>
    %54 = vector.extract_strided_slice %28 {offsets = [0, 0, 5], sizes = [4, 1, 1], strides = [1, 1, 1]} : vector<4x1x8xf32> to vector<4x1x1xf32>
    %55 = vector.broadcast %54 : vector<4x1x1xf32> to vector<4x8x8xf32>
    %56 = arith.mulf %55, %25 : vector<4x8x8xf32>
    %57 = arith.addf %53, %56 : vector<4x8x8xf32>
    %58 = vector.extract_strided_slice %28 {offsets = [0, 0, 6], sizes = [4, 1, 1], strides = [1, 1, 1]} : vector<4x1x8xf32> to vector<4x1x1xf32>
    %59 = vector.broadcast %58 : vector<4x1x1xf32> to vector<4x8x8xf32>
    %60 = arith.mulf %59, %26 : vector<4x8x8xf32>
    %61 = arith.addf %57, %60 : vector<4x8x8xf32>
    %62 = vector.extract_strided_slice %28 {offsets = [0, 0, 7], sizes = [4, 1, 1], strides = [1, 1, 1]} : vector<4x1x8xf32> to vector<4x1x1xf32>
    %63 = vector.broadcast %62 : vector<4x1x1xf32> to vector<4x8x8xf32>
    %64 = arith.mulf %63, %27 : vector<4x8x8xf32>
    %65 = arith.addf %61, %64 : vector<4x8x8xf32>
    %66 = vector.extract_strided_slice %29 {offsets = [0, 0, 1], sizes = [4, 1, 1], strides = [1, 1, 1]} : vector<4x1x2xf32> to vector<4x1x1xf32>
    %67 = vector.broadcast %66 : vector<4x1x1xf32> to vector<4x8x8xf32>
    %68 = arith.addf %65, %67 : vector<4x8x8xf32>
    %c0_18 = arith.constant 0 : index
    %c0_19 = arith.constant 0 : index
    %c1 = arith.constant 1 : index
    %c0_20 = arith.constant 0 : index
    %c0_21 = arith.constant 0 : index
    %69 = vector.load %arg5[%c0_18, %c0_19, %c1, %c0_20, %c0_21] : memref<1x4x2x8x8xf32, #tpu.memory_space<vmem>>, vector<1x4x1x8x8xf32>
    %70 = vector.shape_cast %69 : vector<1x4x1x8x8xf32> to vector<4x8x8xf32>
    %71 = vector.shape_cast %68 : vector<4x8x8xf32> to vector<1x4x1x8x8xf32>
    tpu.vector_store %arg5[%c0_18, %c0_19, %c1, %c0_20, %c0_21], %71 {strides = array<i32>} : memref<1x4x2x8x8xf32, #tpu.memory_space<vmem>>, vector<1x4x1x8x8xf32>,
    return
  }
  func.func @transform_0(%arg0: i32, %arg1: i32) -> (i32, i32, i32, i32) {
    %c0_i32 = arith.constant 0 : i32
    %c0_i32_0 = arith.constant 0 : i32
    %c0_i32_1 = arith.constant 0 : i32
    return %arg0, %arg1, %c0_i32, %c0_i32_0 : i32, i32, i32, i32
  }
  func.func @transform_1(%arg0: i32, %arg1: i32) -> (i32, i32, i32) {
    %c0_i32 = arith.constant 0 : i32
    %c0_i32_0 = arith.constant 0 : i32
    %c0_i32_1 = arith.constant 0 : i32
    return %arg1, %c0_i32, %c0_i32_0 : i32, i32, i32
  }
  func.func @transform_2(%arg0: i32, %arg1: i32) -> (i32, i32, i32) {
    %c0_i32 = arith.constant 0 : i32
    %c0_i32_0 = arith.constant 0 : i32
    %c0_i32_1 = arith.constant 0 : i32
    return %arg1, %c0_i32, %c0_i32_0 : i32, i32, i32
  }
  func.func @transform_3(%arg0: i32, %arg1: i32) -> (i32, i32, i32, i32, i32) {
    %c0_i32 = arith.constant 0 : i32
    %c0_i32_0 = arith.constant 0 : i32
    %c0_i32_1 = arith.constant 0 : i32
    %c0_i32_2 = arith.constant 0 : i32
    return %arg0, %arg1, %c0_i32, %c0_i32_0, %c0_i32_1 : i32, i32, i32, i32, i32
  }
}

</mosaic_0001>

<llo_original>
// kernel: tpu_custom_call.1
$region0: #{tpu_custom_call.1}
  #allocation0 [shape = 'u32[]', space=smem, size = 0x4, offset = 0x4, fixed_abs, tag = 'smem constant byte address 0x4 - core index']
  #allocation1 [shape = 'u32[72,128]{1,0:T(1,128)}', space=vmem, size = 0x9000, scoped, tag = 'internal scratch']
  %s0 = inlined_call_operand.hbm [shape: f32[2,4,8,32], index: 0, kind: input, shape index: {}]
  %s1 = inlined_call_operand.vmem [shape: f32[4,1,8], index: 1, kind: input, shape index: {}]
  %s2 = inlined_call_operand.vmem [shape: f32[4,1,2], index: 2, kind: input, shape index: {}]
  %s3 = inlined_call_operand.hbm [shape: f32[2,4,2,8,8], index: 3, kind: output, shape index: {}]
  %s4 = sld [smem:[#allocation0]]
  $region49: #{tpu_custom_call.1} parent=0
    _
  %s6 = ssub.s32 1, %s4
  %s7 = scalar_select 0, %s6, %s4
  $region1: #{tpu_custom_call.1} parent=0
    #allocation2 [shape = 'u8[32768]{0}', space=vmem, size = 0x8000, scoped, tag = 'input window, operand 0']
    #allocation3 [shape = 's32[2]{0}', space=sflag, size = 0x8, scoped, tag = 'scoped memory for tpu_custom_call.1']
    #allocation4 [shape = 's32[2]{0}', space=sflag, size = 0x8, scoped, tag = 'scoped memory for tpu_custom_call.1']
    #allocation5 [shape = 'u8[65536]{0}', space=vmem, size = 0x10000, scoped, tag = 'output window, operand 0']
    %8 = vsyncpa [#allocation3], 0
    %s9 = scalar_lea.sflag [#allocation3], 1
    %10 = vsyncpa %s9, 0
    %11 = vsyncpa [#allocation4], 0
    %s12 = scalar_lea.sflag [#allocation4], 1
    %13 = vsyncpa %s12, 0
    loop: start=0, step=1, limit=4
    $region2: #{tpu_custom_call.1} parent=1 // loop_pre_header
      _
    $region3: #{tpu_custom_call.1} parent=1 // loop_header
      %s15 = sphi 0, %s19
      %p16 = scmp.ge.s32.totalorder %s15, 4
      %s22 = sphi 0, %s34
      %s23 = sphi 0, %s30
      %s24 = sphi 0, %s22
      %s25 = sphi 0, %s23
      %s26 = sphi 0, %s24
      %s27 = sphi 0, %s25
      %s39 = sphi 0, %s41
      %s42 = sphi 0, %s39
      %s43 = sphi 0, %s42
      %s59 = sphi 0, %s43
      %s65 = sphi 0, %s67
      %s68 = sphi 0, %s65
      %s69 = sphi 0, %s68
      %s85 = sphi 0, %s69
      %s91 = sphi 0, %s93
      %s94 = sphi 0, %s91
      %s95 = sphi 0, %s94
      %s111 = sphi 0, %s95
      %s119 = sphi 0, %s121
      %s122 = sphi 0, %s119
      %s123 = sphi 0, %s122
      %s139 = sphi 0, %s123
    $region4: #{tpu_custom_call.1} parent=1 // loop_header_branch
      %18 = sbr.rel (%p16) target = $region8
    $region5: #{tpu_custom_call.1} parent=1 // loop_body
      %s20 = ssub.s32 %s15, 1
      %s21 = ssub.s32 %s15, 2
      %s28 = sadd.s32 1, %s23
      %p29 = scmp.ge.s32.totalorder %s28, 1
      %s30 = scalar_select %p29, 0, %s28
      %s31 = sadd.s32 1, %s22
      %s32 = scalar_select %p29, %s31, %s22
      %p33 = scmp.ge.s32.totalorder %s32, 2
      %s34 = scalar_select %p33, 0, %s32
      %s35 = ssub.s32 %s22, %s34
      %s36 = ssub.s32 %s23, %s30
      %s37 = sor.u32 %s35, %s36
      %p38 = scmp.eq.s32.totalorder %s37, 0
      %s40 = sadd.s32 %s39, 1
      %s41 = scalar_select %p38, %s39, %s40
      %p44 = pneg %p38
      %p45 = scmp.eq.s32.totalorder %s15, 1
      %p46 = por %p44, %p45
      %p47 = scmp.ne.s32.totalorder %s39, %s42
      %p48 = scmp.eq.s32.totalorder %s15, 0
      %p49 = por %p47, %p48
      %p50 = scmp.ne.s32.totalorder %s39, %s42
      %p51 = scmp.eq.s32.totalorder %s20, 1
      %p52 = por %p50, %p51
      %p53 = scmp.ne.s32.totalorder %s42, %s43
      %p54 = scmp.eq.s32.totalorder %s20, 0
      %p55 = por %p53, %p54
      %p56 = scmp.ne.s32.totalorder %s42, %s43
      %p57 = scmp.eq.s32.totalorder %s21, 1
      %p58 = por %p56, %p57
      %p60 = scmp.ne.s32.totalorder %s43, %s59
      %p61 = scmp.eq.s32.totalorder %s21, 0
      %p62 = por %p60, %p61
      %s63 = ssub.s32 %s23, %s30
      %p64 = scmp.eq.s32.totalorder %s63, 0
      %s66 = sadd.s32 %s65, 1
      %s67 = scalar_select %p64, %s65, %s66
      %p70 = pneg %p64
      %p71 = scmp.eq.s32.totalorder %s15, 1
      %p72 = por %p70, %p71
      %p73 = scmp.ne.s32.totalorder %s65, %s68
      %p74 = scmp.eq.s32.totalorder %s15, 0
      %p75 = por %p73, %p74
      %p76 = scmp.ne.s32.totalorder %s65, %s68
      %p77 = scmp.eq.s32.totalorder %s20, 1
      %p78 = por %p76, %p77
      %p79 = scmp.ne.s32.totalorder %s68, %s69
      %p80 = scmp.eq.s32.totalorder %s20, 0
      %p81 = por %p79, %p80
      %p82 = scmp.ne.s32.totalorder %s68, %s69
      %p83 = scmp.eq.s32.totalorder %s21, 1
      %p84 = por %p82, %p83
      %p86 = scmp.ne.s32.totalorder %s69, %s85
      %p87 = scmp.eq.s32.totalorder %s21, 0
      %p88 = por %p86, %p87
      %s89 = ssub.s32 %s23, %s30
      %p90 = scmp.eq.s32.totalorder %s89, 0
      %s92 = sadd.s32 %s91, 1
      %s93 = scalar_select %p90, %s91, %s92
      %p96 = pneg %p90
      %p97 = scmp.eq.s32.totalorder %s15, 1
      %p98 = por %p96, %p97
      %p99 = scmp.ne.s32.totalorder %s91, %s94
      %p100 = scmp.eq.s32.totalorder %s15, 0
      %p101 = por %p99, %p100
      %p102 = scmp.ne.s32.totalorder %s91, %s94
      %p103 = scmp.eq.s32.totalorder %s20, 1
      %p104 = por %p102, %p103
      %p105 = scmp.ne.s32.totalorder %s94, %s95
      %p106 = scmp.eq.s32.totalorder %s20, 0
      %p107 = por %p105, %p106
      %p108 = scmp.ne.s32.totalorder %s94, %s95
      %p109 = scmp.eq.s32.totalorder %s21, 1
      %p110 = por %p108, %p109
      %p112 = scmp.ne.s32.totalorder %s95, %s111
      %p113 = scmp.eq.s32.totalorder %s21, 0
      %p114 = por %p112, %p113
      %s115 = ssub.s32 %s22, %s34
      %s116 = ssub.s32 %s23, %s30
      %s117 = sor.u32 %s115, %s116
      %p118 = scmp.eq.s32.totalorder %s117, 0
      %s120 = sadd.s32 %s119, 1
      %s121 = scalar_select %p118, %s119, %s120
      %p124 = pneg %p118
      %p125 = scmp.eq.s32.totalorder %s15, 1
      %p126 = por %p124, %p125
      %p127 = scmp.ne.s32.totalorder %s119, %s122
      %p128 = scmp.eq.s32.totalorder %s15, 0
      %p129 = por %p127, %p128
      %p130 = scmp.ne.s32.totalorder %s119, %s122
      %p131 = scmp.eq.s32.totalorder %s20, 1
      %p132 = por %p130, %p131
      %p133 = scmp.ne.s32.totalorder %s122, %s123
      %p134 = scmp.eq.s32.totalorder %s20, 0
      %p135 = por %p133, %p134
      %p136 = scmp.ne.s32.totalorder %s122, %s123
      %p137 = scmp.eq.s32.totalorder %s21, 1
      %p138 = por %p136, %p137
      %p140 = scmp.ne.s32.totalorder %s123, %s139
      %p141 = scmp.eq.s32.totalorder %s21, 0
      %p142 = por %p140, %p141
      %p143 = scmp.le.s32.totalorder 1, %s15
      %p144 = scmp.lt.s32.totalorder %s15, 3
      %p145 = pnand %p143, %p144
      %p146 = pneg %p145
      // Predicated region
      $region9: #{tpu_custom_call.1} parent=5 // pred_check
        _
      $region10: #{tpu_custom_call.1} parent=5 // pred_check_branch
        %148 = sbr.rel (%p145) target = $region12
      $region11: #{tpu_custom_call.1} parent=5 // pred_region
        %s149 = ssub.s32 %s15, 1
        // Predicated region
        $region13: #{tpu_custom_call.1} parent=11 // pred_check
          %p150 = pneg %p81
        $region14: #{tpu_custom_call.1} parent=11 // pred_check_branch
          %152 = sbr.rel (%p150) target = $region16
        $region15: #{tpu_custom_call.1} parent=11 // pred_region
          %s153 = smul.u32 4, %s25
          %p154 = scmp.lt.s32.totalorder %s153, 3
          %s155 = scalar_select %p154, %s153, 3
          %s156 = scalar_lea.vmem %s1, %s155
          %s157 = smul.u32 4, %s25
        $region16: #{tpu_custom_call.1} parent=11 // pred_fallthru
          _
        // Predicated region
        $region17: #{tpu_custom_call.1} parent=11 // pred_check
          %p158 = pneg %p107
        $region18: #{tpu_custom_call.1} parent=11 // pred_check_branch
          %160 = sbr.rel (%p158) target = $region20
        $region19: #{tpu_custom_call.1} parent=11 // pred_region
          %s161 = smul.u32 4, %s25
          %p162 = scmp.lt.s32.totalorder %s161, 3
          %s163 = scalar_select %p162, %s161, 3
          %s164 = scalar_lea.vmem %s2, %s163
          %s165 = smul.u32 4, %s25
        $region20: #{tpu_custom_call.1} parent=11 // pred_fallthru
          _
      $region12: #{tpu_custom_call.1} parent=5 // pred_fallthru
        _
      %p166 = scmp.lt.s32.totalorder %s15, 2
      // Predicated region
      $region21: #{tpu_custom_call.1} parent=5 // pred_check
        %p167 = pneg %p166
      $region22: #{tpu_custom_call.1} parent=5 // pred_check_branch
        %169 = sbr.rel (%p167) target = $region24
      $region23: #{tpu_custom_call.1} parent=5 // pred_region
        // Predicated region
        $region25: #{tpu_custom_call.1} parent=23 // pred_check
          %p170 = pneg %p49
        $region26: #{tpu_custom_call.1} parent=23 // pred_check_branch
          %172 = sbr.rel (%p170) target = $region28
        $region27: #{tpu_custom_call.1} parent=23 // pred_region
          %s173 = sand.u32 %s39, 1
          %s174 = scalar_lea.sflag [#allocation3], %s173
          %s175 = sand.u32 %s39, 1
          %s176 = smul.addr %s175, 32
          %s177 = scalar_lea.vmem [#allocation2], %s176
          %s178 = smul.u32 4, %s23
          %180 = vsyncadd %s174, 0
          %s181 = smul.addr %s22, 4
          %s182 = sadd.s32 %s178, %s181
          %s183 = smul.addr %s182, 8
          %s184 = scalar_lea.hbm %s0, %s183
          %s185 = sshll.u32 %s184, 4
          %s186 = int_to_ptr.hbm [resolvable:$true] %s185
          %s187 = sshll.u32 %s177, 4
          %s188 = int_to_ptr.vmem [resolvable:$true] %s187
          %193 = dma.hbm_to_vmem [thread:$0]  %s186, 512, %s188, %s174, 128, 128, 8
        $region28: #{tpu_custom_call.1} parent=23 // pred_fallthru
          _
      $region24: #{tpu_custom_call.1} parent=5 // pred_fallthru
        _
      %p194 = scmp.le.s32.totalorder 1, %s15
      %p195 = scmp.lt.s32.totalorder %s15, 3
      %p196 = pnand %p194, %p195
      %p197 = pneg %p196
      // Predicated region
      $region29: #{tpu_custom_call.1} parent=5 // pred_check
        _
      $region30: #{tpu_custom_call.1} parent=5 // pred_check_branch
        %199 = sbr.rel (%p196) target = $region32
      $region31: #{tpu_custom_call.1} parent=5 // pred_region
        %s200 = ssub.s32 %s15, 1
        %s201 = sand.u32 %s42, 1
        %s202 = scalar_lea.sflag [#allocation3], %s201
        %s203 = sand.u32 %s42, 1
        %s204 = smul.addr %s203, 32
        %s205 = scalar_lea.vmem [#allocation2], %s204
        // Predicated region
        $region33: #{tpu_custom_call.1} parent=31 // pred_check
          %p206 = pneg %p55
        $region34: #{tpu_custom_call.1} parent=31 // pred_check_branch
          %208 = sbr.rel (%p206) target = $region36
        $region35: #{tpu_custom_call.1} parent=31 // pred_region
          %210 = dma.done %s202, 512
        $region36: #{tpu_custom_call.1} parent=31 // pred_fallthru
          _
        %s211 = sand.u32 %s42, 1
        %s212 = scalar_lea.sflag [#allocation3], %s211
        %s213 = sand.u32 %s42, 1
        %s214 = smul.addr %s213, 32
        %s215 = scalar_lea.vmem [#allocation2], %s214
        %p216 = pneg %p55
        %p217 = pneg %p52
        %s218 = smul.u32 4, %s25
        %p219 = scmp.lt.s32.totalorder %s218, 3
        %s220 = scalar_select %p219, %s218, 3
        %s221 = scalar_lea.vmem %s1, %s220
        %p222 = pneg %p81
        %p223 = pneg %p78
        %s224 = smul.u32 4, %s25
        %p225 = scmp.lt.s32.totalorder %s224, 3
        %s226 = scalar_select %p225, %s224, 3
        %s227 = scalar_lea.vmem %s2, %s226
        %p228 = pneg %p107
        %p229 = pneg %p104
        %p230 = pneg %p135
        %p231 = pneg %p132
        %s232 = sand.u32 %s122, 1
        %s233 = scalar_lea.sflag [#allocation4], %s232
        %s234 = sand.u32 %s122, 1
        %s235 = smul.addr %s234, 64
        %s236 = scalar_lea.vmem [#allocation5], %s235
        %s237 = smul.u32 4, %s25
        %s238 = smul.u32 4, %s25
        %p239 = scmp.lt.s32.totalorder %s238, 3
        %s240 = scalar_select %p239, %s238, 3
        %s241 = scalar_lea.vmem %s1, %s240
        %s242 = smul.u32 4, %s25
        %s243 = smul.u32 4, %s25
        %p244 = scmp.lt.s32.totalorder %s243, 3
        %s245 = scalar_select %p244, %s243, 3
        %s246 = scalar_lea.vmem %s2, %s245
        %s247 = smul.u32 4, %s25
        %s248 = smul.u32 4, %s25
        %v249 = vld [vmem:[%s205] sm:$0xff]
        %v250 = vld [vmem:[%s205 + $0x8] sm:$0xff]
        %v251 = vld [vmem:[%s205 + $0x10] sm:$0xff]
        %v252 = vld [vmem:[%s205 + $0x18] sm:$0xff]
        %v253 = vlaneseq
        %v254 = vshrl.u32 %v253, 7
        %v255 = vlaneseq
        %v256 = vand.u32 %v255, 127
        %v257 = vmul.u32 %v254, 2
        %vm258 = vcmp.eq.s32.totalorder %v256, %v257
        %v259 = vsel %vm258, 1, 0
        %v260 = vcvt.s32.f32 %v259
        %v261 = vadd.s32 %v257, 1
        %vm262 = vcmp.eq.s32.totalorder %v256, %v261
        %v263 = vsel %vm262, 1, 0
        %v264 = vcvt.s32.f32 %v263
        %vm265 = vcmask 130048
        %v267 = vsel %vm265, %v249, 0
        %v270 = vsel %vm265, %v260, 0
        %272 = vmatpush.xpose.msra.mxu0 0.0
        %273 = vmatpush.xpose.msra.mxu0 0.0
        %274 = vmatpush.xpose.msra.mxu0 0.0
        %275 = vmatpush.xpose.msra.mxu0 0.0
        %276 = vmatpush.xpose.msra.mxu0 0.0
        %277 = vmatpush.xpose.msra.mxu0 0.0
        %278 = vmatpush.xpose.msra.mxu0 0.0
        %279 = vmatpush.xpose.msra.mxu0 0.0
        %280 = vmatpush.xpose.msra.mxu0 0.0
        %281 = vmatpush.xpose.msra.mxu0 0.0
        %282 = vmatpush.xpose.msra.mxu0 0.0
        %283 = vmatpush.xpose.msra.mxu0 0.0
        %284 = vmatpush.xpose.msra.mxu0 0.0
        %285 = vmatpush.xpose.msra.mxu0 0.0
        %286 = vmatpush.xpose.msra.mxu0 0.0
        %287 = vmatpush.xpose.msra.mxu0 %v270
        %288 = vmatmul.f32.gmra.mxu0 %v267
        %v289 = vpop.f32.mrf.mxu0
        %v290 = vadd.f32 0.0, %v289
        %291 = vdwg.mxu0
        %v293 = vsel %vm265, %v250, 0
        %295 = vmatpush.xpose.msra.mxu0 0.0
        %296 = vmatpush.xpose.msra.mxu0 0.0
        %297 = vmatpush.xpose.msra.mxu0 0.0
        %298 = vmatpush.xpose.msra.mxu0 0.0
        %299 = vmatpush.xpose.msra.mxu0 0.0
        %300 = vmatpush.xpose.msra.mxu0 0.0
        %301 = vmatpush.xpose.msra.mxu0 0.0
        %302 = vmatpush.xpose.msra.mxu0 0.0
        %303 = vmatpush.xpose.msra.mxu0 0.0
        %304 = vmatpush.xpose.msra.mxu0 0.0
        %305 = vmatpush.xpose.msra.mxu0 0.0
        %306 = vmatpush.xpose.msra.mxu0 0.0
        %307 = vmatpush.xpose.msra.mxu0 0.0
        %308 = vmatpush.xpose.msra.mxu0 0.0
        %309 = vmatpush.xpose.msra.mxu0 0.0
        %310 = vmatpush.xpose.msra.mxu0 %v270
        %311 = vmatmul.f32.gmra.mxu0 %v293
        %v312 = vpop.f32.mrf.mxu0
        %v313 = vadd.f32 0.0, %v312
        %314 = vdwg.mxu0
        %v316 = vsel %vm265, %v251, 0
        %318 = vmatpush.xpose.msra.mxu0 0.0
        %319 = vmatpush.xpose.msra.mxu0 0.0
        %320 = vmatpush.xpose.msra.mxu0 0.0
        %321 = vmatpush.xpose.msra.mxu0 0.0
        %322 = vmatpush.xpose.msra.mxu0 0.0
        %323 = vmatpush.xpose.msra.mxu0 0.0
        %324 = vmatpush.xpose.msra.mxu0 0.0
        %325 = vmatpush.xpose.msra.mxu0 0.0
        %326 = vmatpush.xpose.msra.mxu0 0.0
        %327 = vmatpush.xpose.msra.mxu0 0.0
        %328 = vmatpush.xpose.msra.mxu0 0.0
        %329 = vmatpush.xpose.msra.mxu0 0.0
        %330 = vmatpush.xpose.msra.mxu0 0.0
        %331 = vmatpush.xpose.msra.mxu0 0.0
        %332 = vmatpush.xpose.msra.mxu0 0.0
        %333 = vmatpush.xpose.msra.mxu0 %v270
        %334 = vmatmul.f32.gmra.mxu0 %v316
        %v335 = vpop.f32.mrf.mxu0
        %v336 = vadd.f32 0.0, %v335
        %337 = vdwg.mxu0
        %v339 = vsel %vm265, %v252, 0
        %341 = vmatpush.xpose.msra.mxu0 0.0
        %342 = vmatpush.xpose.msra.mxu0 0.0
        %343 = vmatpush.xpose.msra.mxu0 0.0
        %344 = vmatpush.xpose.msra.mxu0 0.0
        %345 = vmatpush.xpose.msra.mxu0 0.0
        %346 = vmatpush.xpose.msra.mxu0 0.0
        %347 = vmatpush.xpose.msra.mxu0 0.0
        %348 = vmatpush.xpose.msra.mxu0 0.0
        %349 = vmatpush.xpose.msra.mxu0 0.0
        %350 = vmatpush.xpose.msra.mxu0 0.0
        %351 = vmatpush.xpose.msra.mxu0 0.0
        %352 = vmatpush.xpose.msra.mxu0 0.0
        %353 = vmatpush.xpose.msra.mxu0 0.0
        %354 = vmatpush.xpose.msra.mxu0 0.0
        %355 = vmatpush.xpose.msra.mxu0 0.0
        %356 = vmatpush.xpose.msra.mxu0 %v270
        %357 = vmatmul.f32.gmra.mxu0 %v339
        %v358 = vpop.f32.mrf.mxu0
        %v359 = vadd.f32 0.0, %v358
        %360 = vdwg.mxu0
        %v362 = vsel %vm265, %v264, 0
        %364 = vmatpush.xpose.msra.mxu0 0.0
        %365 = vmatpush.xpose.msra.mxu0 0.0
        %366 = vmatpush.xpose.msra.mxu0 0.0
        %367 = vmatpush.xpose.msra.mxu0 0.0
        %368 = vmatpush.xpose.msra.mxu0 0.0
        %369 = vmatpush.xpose.msra.mxu0 0.0
        %370 = vmatpush.xpose.msra.mxu0 0.0
        %371 = vmatpush.xpose.msra.mxu0 0.0
        %372 = vmatpush.xpose.msra.mxu0 0.0
        %373 = vmatpush.xpose.msra.mxu0 0.0
        %374 = vmatpush.xpose.msra.mxu0 0.0
        %375 = vmatpush.xpose.msra.mxu0 0.0
        %376 = vmatpush.xpose.msra.mxu0 0.0
        %377 = vmatpush.xpose.msra.mxu0 0.0
        %378 = vmatpush.xpose.msra.mxu0 0.0
        %379 = vmatpush.xpose.msra.mxu0 %v362
        %380 = vmatmul.f32.gmra.mxu0 %v267
        %v381 = vpop.f32.mrf.mxu0
        %v382 = vadd.f32 0.0, %v381
        %383 = vdwg.mxu0
        %384 = vmatpush.xpose.msra.mxu0 0.0
        %385 = vmatpush.xpose.msra.mxu0 0.0
        %386 = vmatpush.xpose.msra.mxu0 0.0
        %387 = vmatpush.xpose.msra.mxu0 0.0
        %388 = vmatpush.xpose.msra.mxu0 0.0
        %389 = vmatpush.xpose.msra.mxu0 0.0
        %390 = vmatpush.xpose.msra.mxu0 0.0
        %391 = vmatpush.xpose.msra.mxu0 0.0
        %392 = vmatpush.xpose.msra.mxu0 0.0
        %393 = vmatpush.xpose.msra.mxu0 0.0
        %394 = vmatpush.xpose.msra.mxu0 0.0
        %395 = vmatpush.xpose.msra.mxu0 0.0
        %396 = vmatpush.xpose.msra.mxu0 0.0
        %397 = vmatpush.xpose.msra.mxu0 0.0
        %398 = vmatpush.xpose.msra.mxu0 0.0
        %399 = vmatpush.xpose.msra.mxu0 %v362
        %400 = vmatmul.f32.gmra.mxu0 %v293
        %v401 = vpop.f32.mrf.mxu0
        %v402 = vadd.f32 0.0, %v401
        %403 = vdwg.mxu0
        %404 = vmatpush.xpose.msra.mxu0 0.0
        %405 = vmatpush.xpose.msra.mxu0 0.0
        %406 = vmatpush.xpose.msra.mxu0 0.0
        %407 = vmatpush.xpose.msra.mxu0 0.0
        %408 = vmatpush.xpose.msra.mxu0 0.0
        %409 = vmatpush.xpose.msra.mxu0 0.0
        %410 = vmatpush.xpose.msra.mxu0 0.0
        %411 = vmatpush.xpose.msra.mxu0 0.0
        %412 = vmatpush.xpose.msra.mxu0 0.0
        %413 = vmatpush.xpose.msra.mxu0 0.0
        %414 = vmatpush.xpose.msra.mxu0 0.0
        %415 = vmatpush.xpose.msra.mxu0 0.0
        %416 = vmatpush.xpose.msra.mxu0 0.0
        %417 = vmatpush.xpose.msra.mxu0 0.0
        %418 = vmatpush.xpose.msra.mxu0 0.0
        %419 = vmatpush.xpose.msra.mxu0 %v362
        %420 = vmatmul.f32.gmra.mxu0 %v316
        %v421 = vpop.f32.mrf.mxu0
        %v422 = vadd.f32 0.0, %v421
        %423 = vdwg.mxu0
        %424 = vmatpush.xpose.msra.mxu0 0.0
        %425 = vmatpush.xpose.msra.mxu0 0.0
        %426 = vmatpush.xpose.msra.mxu0 0.0
        %427 = vmatpush.xpose.msra.mxu0 0.0
        %428 = vmatpush.xpose.msra.mxu0 0.0
        %429 = vmatpush.xpose.msra.mxu0 0.0
        %430 = vmatpush.xpose.msra.mxu0 0.0
        %431 = vmatpush.xpose.msra.mxu0 0.0
        %432 = vmatpush.xpose.msra.mxu0 0.0
        %433 = vmatpush.xpose.msra.mxu0 0.0
        %434 = vmatpush.xpose.msra.mxu0 0.0
        %435 = vmatpush.xpose.msra.mxu0 0.0
        %436 = vmatpush.xpose.msra.mxu0 0.0
        %437 = vmatpush.xpose.msra.mxu0 0.0
        %438 = vmatpush.xpose.msra.mxu0 0.0
        %439 = vmatpush.xpose.msra.mxu0 %v362
        %440 = vmatmul.f32.gmra.mxu0 %v339
        %v441 = vpop.f32.mrf.mxu0
        %v442 = vadd.f32 0.0, %v441
        %443 = vdwg.mxu0
        %444 = vrot.lane.b32.xlu0 %v249, 112
        %v445 = vpop.permute.xlu0 %444
        %v446 = vsel %vm265, %v445, 0
        %448 = vmatpush.xpose.msra.mxu0 0.0
        %449 = vmatpush.xpose.msra.mxu0 0.0
        %450 = vmatpush.xpose.msra.mxu0 0.0
        %451 = vmatpush.xpose.msra.mxu0 0.0
        %452 = vmatpush.xpose.msra.mxu0 0.0
        %453 = vmatpush.xpose.msra.mxu0 0.0
        %454 = vmatpush.xpose.msra.mxu0 0.0
        %455 = vmatpush.xpose.msra.mxu0 0.0
        %456 = vmatpush.xpose.msra.mxu0 0.0
        %457 = vmatpush.xpose.msra.mxu0 0.0
        %458 = vmatpush.xpose.msra.mxu0 0.0
        %459 = vmatpush.xpose.msra.mxu0 0.0
        %460 = vmatpush.xpose.msra.mxu0 0.0
        %461 = vmatpush.xpose.msra.mxu0 0.0
        %462 = vmatpush.xpose.msra.mxu0 0.0
        %463 = vmatpush.xpose.msra.mxu0 %v270
        %464 = vmatmul.f32.gmra.mxu0 %v446
        %v465 = vpop.f32.mrf.mxu0
        %v466 = vadd.f32 0.0, %v465
        %467 = vdwg.mxu0
        %468 = vrot.lane.b32.xlu0 %v250, 112
        %v469 = vpop.permute.xlu0 %468
        %v470 = vsel %vm265, %v469, 0
        %472 = vmatpush.xpose.msra.mxu0 0.0
        %473 = vmatpush.xpose.msra.mxu0 0.0
        %474 = vmatpush.xpose.msra.mxu0 0.0
        %475 = vmatpush.xpose.msra.mxu0 0.0
        %476 = vmatpush.xpose.msra.mxu0 0.0
        %477 = vmatpush.xpose.msra.mxu0 0.0
        %478 = vmatpush.xpose.msra.mxu0 0.0
        %479 = vmatpush.xpose.msra.mxu0 0.0
        %480 = vmatpush.xpose.msra.mxu0 0.0
        %481 = vmatpush.xpose.msra.mxu0 0.0
        %482 = vmatpush.xpose.msra.mxu0 0.0
        %483 = vmatpush.xpose.msra.mxu0 0.0
        %484 = vmatpush.xpose.msra.mxu0 0.0
        %485 = vmatpush.xpose.msra.mxu0 0.0
        %486 = vmatpush.xpose.msra.mxu0 0.0
        %487 = vmatpush.xpose.msra.mxu0 %v270
        %488 = vmatmul.f32.gmra.mxu0 %v470
        %v489 = vpop.f32.mrf.mxu0
        %v490 = vadd.f32 0.0, %v489
        %491 = vdwg.mxu0
        %492 = vrot.lane.b32.xlu0 %v251, 112
        %v493 = vpop.permute.xlu0 %492
        %v494 = vsel %vm265, %v493, 0
        %496 = vmatpush.xpose.msra.mxu0 0.0
        %497 = vmatpush.xpose.msra.mxu0 0.0
        %498 = vmatpush.xpose.msra.mxu0 0.0
        %499 = vmatpush.xpose.msra.mxu0 0.0
        %500 = vmatpush.xpose.msra.mxu0 0.0
        %501 = vmatpush.xpose.msra.mxu0 0.0
        %502 = vmatpush.xpose.msra.mxu0 0.0
        %503 = vmatpush.xpose.msra.mxu0 0.0
        %504 = vmatpush.xpose.msra.mxu0 0.0
        %505 = vmatpush.xpose.msra.mxu0 0.0
        %506 = vmatpush.xpose.msra.mxu0 0.0
        %507 = vmatpush.xpose.msra.mxu0 0.0
        %508 = vmatpush.xpose.msra.mxu0 0.0
        %509 = vmatpush.xpose.msra.mxu0 0.0
        %510 = vmatpush.xpose.msra.mxu0 0.0
        %511 = vmatpush.xpose.msra.mxu0 %v270
        %512 = vmatmul.f32.gmra.mxu0 %v494
        %v513 = vpop.f32.mrf.mxu0
        %v514 = vadd.f32 0.0, %v513
        %515 = vdwg.mxu0
        %516 = vrot.lane.b32.xlu0 %v252, 112
        %v517 = vpop.permute.xlu0 %516
        %v518 = vsel %vm265, %v517, 0
        %520 = vmatpush.xpose.msra.mxu0 0.0
        %521 = vmatpush.xpose.msra.mxu0 0.0
        %522 = vmatpush.xpose.msra.mxu0 0.0
        %523 = vmatpush.xpose.msra.mxu0 0.0
        %524 = vmatpush.xpose.msra.mxu0 0.0
        %525 = vmatpush.xpose.msra.mxu0 0.0
        %526 = vmatpush.xpose.msra.mxu0 0.0
        %527 = vmatpush.xpose.msra.mxu0 0.0
        %528 = vmatpush.xpose.msra.mxu0 0.0
        %529 = vmatpush.xpose.msra.mxu0 0.0
        %530 = vmatpush.xpose.msra.mxu0 0.0
        %531 = vmatpush.xpose.msra.mxu0 0.0
        %532 = vmatpush.xpose.msra.mxu0 0.0
        %533 = vmatpush.xpose.msra.mxu0 0.0
        %534 = vmatpush.xpose.msra.mxu0 0.0
        %535 = vmatpush.xpose.msra.mxu0 %v270
        %536 = vmatmul.f32.gmra.mxu0 %v518
        %v537 = vpop.f32.mrf.mxu0
        %v538 = vadd.f32 0.0, %v537
        %539 = vdwg.mxu0
        %540 = vmatpush.xpose.msra.mxu0 0.0
        %541 = vmatpush.xpose.msra.mxu0 0.0
        %542 = vmatpush.xpose.msra.mxu0 0.0
        %543 = vmatpush.xpose.msra.mxu0 0.0
        %544 = vmatpush.xpose.msra.mxu0 0.0
        %545 = vmatpush.xpose.msra.mxu0 0.0
        %546 = vmatpush.xpose.msra.mxu0 0.0
        %547 = vmatpush.xpose.msra.mxu0 0.0
        %548 = vmatpush.xpose.msra.mxu0 0.0
        %549 = vmatpush.xpose.msra.mxu0 0.0
        %550 = vmatpush.xpose.msra.mxu0 0.0
        %551 = vmatpush.xpose.msra.mxu0 0.0
        %552 = vmatpush.xpose.msra.mxu0 0.0
        %553 = vmatpush.xpose.msra.mxu0 0.0
        %554 = vmatpush.xpose.msra.mxu0 0.0
        %555 = vmatpush.xpose.msra.mxu0 %v362
        %556 = vmatmul.f32.gmra.mxu0 %v446
        %v557 = vpop.f32.mrf.mxu0
        %v558 = vadd.f32 0.0, %v557
        %559 = vdwg.mxu0
        %560 = vmatpush.xpose.msra.mxu0 0.0
        %561 = vmatpush.xpose.msra.mxu0 0.0
        %562 = vmatpush.xpose.msra.mxu0 0.0
        %563 = vmatpush.xpose.msra.mxu0 0.0
        %564 = vmatpush.xpose.msra.mxu0 0.0
        %565 = vmatpush.xpose.msra.mxu0 0.0
        %566 = vmatpush.xpose.msra.mxu0 0.0
        %567 = vmatpush.xpose.msra.mxu0 0.0
        %568 = vmatpush.xpose.msra.mxu0 0.0
        %569 = vmatpush.xpose.msra.mxu0 0.0
        %570 = vmatpush.xpose.msra.mxu0 0.0
        %571 = vmatpush.xpose.msra.mxu0 0.0
        %572 = vmatpush.xpose.msra.mxu0 0.0
        %573 = vmatpush.xpose.msra.mxu0 0.0
        %574 = vmatpush.xpose.msra.mxu0 0.0
        %575 = vmatpush.xpose.msra.mxu0 %v362
        %576 = vmatmul.f32.gmra.mxu0 %v470
        %v577 = vpop.f32.mrf.mxu0
        %v578 = vadd.f32 0.0, %v577
        %579 = vdwg.mxu0
        %580 = vmatpush.xpose.msra.mxu0 0.0
        %581 = vmatpush.xpose.msra.mxu0 0.0
        %582 = vmatpush.xpose.msra.mxu0 0.0
        %583 = vmatpush.xpose.msra.mxu0 0.0
        %584 = vmatpush.xpose.msra.mxu0 0.0
        %585 = vmatpush.xpose.msra.mxu0 0.0
        %586 = vmatpush.xpose.msra.mxu0 0.0
        %587 = vmatpush.xpose.msra.mxu0 0.0
        %588 = vmatpush.xpose.msra.mxu0 0.0
        %589 = vmatpush.xpose.msra.mxu0 0.0
        %590 = vmatpush.xpose.msra.mxu0 0.0
        %591 = vmatpush.xpose.msra.mxu0 0.0
        %592 = vmatpush.xpose.msra.mxu0 0.0
        %593 = vmatpush.xpose.msra.mxu0 0.0
        %594 = vmatpush.xpose.msra.mxu0 0.0
        %595 = vmatpush.xpose.msra.mxu0 %v362
        %596 = vmatmul.f32.gmra.mxu0 %v494
        %v597 = vpop.f32.mrf.mxu0
        %v598 = vadd.f32 0.0, %v597
        %599 = vdwg.mxu0
        %600 = vmatpush.xpose.msra.mxu0 0.0
        %601 = vmatpush.xpose.msra.mxu0 0.0
        %602 = vmatpush.xpose.msra.mxu0 0.0
        %603 = vmatpush.xpose.msra.mxu0 0.0
        %604 = vmatpush.xpose.msra.mxu0 0.0
        %605 = vmatpush.xpose.msra.mxu0 0.0
        %606 = vmatpush.xpose.msra.mxu0 0.0
        %607 = vmatpush.xpose.msra.mxu0 0.0
        %608 = vmatpush.xpose.msra.mxu0 0.0
        %609 = vmatpush.xpose.msra.mxu0 0.0
        %610 = vmatpush.xpose.msra.mxu0 0.0
        %611 = vmatpush.xpose.msra.mxu0 0.0
        %612 = vmatpush.xpose.msra.mxu0 0.0
        %613 = vmatpush.xpose.msra.mxu0 0.0
        %614 = vmatpush.xpose.msra.mxu0 0.0
        %615 = vmatpush.xpose.msra.mxu0 %v362
        %616 = vmatmul.f32.gmra.mxu0 %v518
        %v617 = vpop.f32.mrf.mxu0
        %v618 = vadd.f32 0.0, %v617
        %619 = vdwg.mxu0
        %v620 = vld [vmem:[%s241] sm:$0x1]
        %v621 = vld [vmem:[%s241 + $0x1] sm:$0x1]
        %v622 = vld [vmem:[%s241 + $0x2] sm:$0x1]
        %v623 = vld [vmem:[%s241 + $0x3] sm:$0x1]
        %v624 = vld [vmem:[%s246] sm:$0x1]
        %v625 = vld [vmem:[%s246 + $0x1] sm:$0x1]
        %v626 = vld [vmem:[%s246 + $0x2] sm:$0x1]
        %v627 = vld [vmem:[%s246 + $0x3] sm:$0x1]
        %v632 = vperm.slane %v620, 0
        %v633 = vperm.slane %v621, 0
        %v634 = vperm.slane %v622, 0
        %v635 = vperm.slane %v623, 0
        %636 = vset.pattern.permute.xlu0 0
        %637 = vperm.xlu0 %636, %v632
        %v638 = vpop.permute.xlu0 %637
        %640 = vset.pattern.permute.xlu0 0
        %641 = vperm.xlu0 %640, %v633
        %v642 = vpop.permute.xlu0 %641
        %644 = vset.pattern.permute.xlu0 0
        %645 = vperm.xlu0 %644, %v634
        %v646 = vpop.permute.xlu0 %645
        %648 = vset.pattern.permute.xlu0 0
        %649 = vperm.xlu0 %648, %v635
        %v650 = vpop.permute.xlu0 %649
        %v652 = vmul.f32 %v638, %v290
        %v653 = vmul.f32 %v642, %v313
        %v654 = vmul.f32 %v646, %v336
        %v655 = vmul.f32 %v650, %v359
        %656 = vset.pattern.permute.xlu0 1
        %657 = vperm.xlu0 %656, %v632
        %v658 = vpop.permute.xlu0 %657
        %660 = vset.pattern.permute.xlu0 1
        %661 = vperm.xlu0 %660, %v633
        %v662 = vpop.permute.xlu0 %661
        %664 = vset.pattern.permute.xlu0 1
        %665 = vperm.xlu0 %664, %v634
        %v666 = vpop.permute.xlu0 %665
        %668 = vset.pattern.permute.xlu0 1
        %669 = vperm.xlu0 %668, %v635
        %v670 = vpop.permute.xlu0 %669
        %v672 = vmul.f32 %v658, %v382
        %v673 = vmul.f32 %v662, %v402
        %v674 = vmul.f32 %v666, %v422
        %v675 = vmul.f32 %v670, %v442
        %v676 = vadd.f32 %v652, %v672
        %v677 = vadd.f32 %v653, %v673
        %v678 = vadd.f32 %v654, %v674
        %v679 = vadd.f32 %v655, %v675
        %680 = vset.pattern.permute.xlu0 2
        %681 = vperm.xlu0 %680, %v632
        %v682 = vpop.permute.xlu0 %681
        %684 = vset.pattern.permute.xlu0 2
        %685 = vperm.xlu0 %684, %v633
        %v686 = vpop.permute.xlu0 %685
        %688 = vset.pattern.permute.xlu0 2
        %689 = vperm.xlu0 %688, %v634
        %v690 = vpop.permute.xlu0 %689
        %692 = vset.pattern.permute.xlu0 2
        %693 = vperm.xlu0 %692, %v635
        %v694 = vpop.permute.xlu0 %693
        %v696 = vmul.f32 %v682, %v466
        %v697 = vmul.f32 %v686, %v490
        %v698 = vmul.f32 %v690, %v514
        %v699 = vmul.f32 %v694, %v538
        %v700 = vadd.f32 %v676, %v696
        %v701 = vadd.f32 %v677, %v697
        %v702 = vadd.f32 %v678, %v698
        %v703 = vadd.f32 %v679, %v699
        %704 = vset.pattern.permute.xlu0 3
        %705 = vperm.xlu0 %704, %v632
        %v706 = vpop.permute.xlu0 %705
        %708 = vset.pattern.permute.xlu0 3
        %709 = vperm.xlu0 %708, %v633
        %v710 = vpop.permute.xlu0 %709
        %712 = vset.pattern.permute.xlu0 3
        %713 = vperm.xlu0 %712, %v634
        %v714 = vpop.permute.xlu0 %713
        %716 = vset.pattern.permute.xlu0 3
        %717 = vperm.xlu0 %716, %v635
        %v718 = vpop.permute.xlu0 %717
        %v720 = vmul.f32 %v706, %v558
        %v721 = vmul.f32 %v710, %v578
        %v722 = vmul.f32 %v714, %v598
        %v723 = vmul.f32 %v718, %v618
        %v724 = vadd.f32 %v700, %v720
        %v725 = vadd.f32 %v701, %v721
        %v726 = vadd.f32 %v702, %v722
        %v727 = vadd.f32 %v703, %v723
        %v732 = vperm.slane %v624, 0
        %v733 = vperm.slane %v625, 0
        %v734 = vperm.slane %v626, 0
        %v735 = vperm.slane %v627, 0
        %736 = vset.pattern.permute.xlu0 0
        %737 = vperm.xlu0 %736, %v732
        %v738 = vpop.permute.xlu0 %737
        %740 = vset.pattern.permute.xlu0 0
        %741 = vperm.xlu0 %740, %v733
        %v742 = vpop.permute.xlu0 %741
        %744 = vset.pattern.permute.xlu0 0
        %745 = vperm.xlu0 %744, %v734
        %v746 = vpop.permute.xlu0 %745
        %748 = vset.pattern.permute.xlu0 0
        %749 = vperm.xlu0 %748, %v735
        %v750 = vpop.permute.xlu0 %749
        %v752 = vadd.f32 %v724, %v738
        %v753 = vadd.f32 %v725, %v742
        %v754 = vadd.f32 %v726, %v746
        %v755 = vadd.f32 %v727, %v750
        %vm756 = vcmask 64512
        %757 = vst.msk [vmem:[%s236] sm:$0xff] %vm756, %v752
        %758 = vst.msk [vmem:[%s236 + $0x10] sm:$0xff] %vm756, %v753
        %759 = vst.msk [vmem:[%s236 + $0x20] sm:$0xff] %vm756, %v754
        %760 = vst.msk [vmem:[%s236 + $0x30] sm:$0xff] %vm756, %v755
        %761 = vset.pattern.permute.xlu0 4
        %762 = vperm.xlu0 %761, %v632
        %v763 = vpop.permute.xlu0 %762
        %765 = vset.pattern.permute.xlu0 4
        %766 = vperm.xlu0 %765, %v633
        %v767 = vpop.permute.xlu0 %766
        %769 = vset.pattern.permute.xlu0 4
        %770 = vperm.xlu0 %769, %v634
        %v771 = vpop.permute.xlu0 %770
        %773 = vset.pattern.permute.xlu0 4
        %774 = vperm.xlu0 %773, %v635
        %v775 = vpop.permute.xlu0 %774
        %v777 = vmul.f32 %v763, %v290
        %v778 = vmul.f32 %v767, %v313
        %v779 = vmul.f32 %v771, %v336
        %v780 = vmul.f32 %v775, %v359
        %781 = vset.pattern.permute.xlu0 5
        %782 = vperm.xlu0 %781, %v632
        %v783 = vpop.permute.xlu0 %782
        %785 = vset.pattern.permute.xlu0 5
        %786 = vperm.xlu0 %785, %v633
        %v787 = vpop.permute.xlu0 %786
        %789 = vset.pattern.permute.xlu0 5
        %790 = vperm.xlu0 %789, %v634
        %v791 = vpop.permute.xlu0 %790
        %793 = vset.pattern.permute.xlu0 5
        %794 = vperm.xlu0 %793, %v635
        %v795 = vpop.permute.xlu0 %794
        %v797 = vmul.f32 %v783, %v382
        %v798 = vmul.f32 %v787, %v402
        %v799 = vmul.f32 %v791, %v422
        %v800 = vmul.f32 %v795, %v442
        %v801 = vadd.f32 %v777, %v797
        %v802 = vadd.f32 %v778, %v798
        %v803 = vadd.f32 %v779, %v799
        %v804 = vadd.f32 %v780, %v800
        %805 = vset.pattern.permute.xlu0 6
        %806 = vperm.xlu0 %805, %v632
        %v807 = vpop.permute.xlu0 %806
        %809 = vset.pattern.permute.xlu0 6
        %810 = vperm.xlu0 %809, %v633
        %v811 = vpop.permute.xlu0 %810
        %813 = vset.pattern.permute.xlu0 6
        %814 = vperm.xlu0 %813, %v634
        %v815 = vpop.permute.xlu0 %814
        %817 = vset.pattern.permute.xlu0 6
        %818 = vperm.xlu0 %817, %v635
        %v819 = vpop.permute.xlu0 %818
        %v821 = vmul.f32 %v807, %v466
        %v822 = vmul.f32 %v811, %v490
        %v823 = vmul.f32 %v815, %v514
        %v824 = vmul.f32 %v819, %v538
        %v825 = vadd.f32 %v801, %v821
        %v826 = vadd.f32 %v802, %v822
        %v827 = vadd.f32 %v803, %v823
        %v828 = vadd.f32 %v804, %v824
        %829 = vset.pattern.permute.xlu0 7
        %830 = vperm.xlu0 %829, %v632
        %v831 = vpop.permute.xlu0 %830
        %833 = vset.pattern.permute.xlu0 7
        %834 = vperm.xlu0 %833, %v633
        %v835 = vpop.permute.xlu0 %834
        %837 = vset.pattern.permute.xlu0 7
        %838 = vperm.xlu0 %837, %v634
        %v839 = vpop.permute.xlu0 %838
        %841 = vset.pattern.permute.xlu0 7
        %842 = vperm.xlu0 %841, %v635
        %v843 = vpop.permute.xlu0 %842
        %v845 = vmul.f32 %v831, %v558
        %v846 = vmul.f32 %v835, %v578
        %v847 = vmul.f32 %v839, %v598
        %v848 = vmul.f32 %v843, %v618
        %v849 = vadd.f32 %v825, %v845
        %v850 = vadd.f32 %v826, %v846
        %v851 = vadd.f32 %v827, %v847
        %v852 = vadd.f32 %v828, %v848
        %853 = vset.pattern.permute.xlu0 1
        %854 = vperm.xlu0 %853, %v732
        %v855 = vpop.permute.xlu0 %854
        %857 = vset.pattern.permute.xlu0 1
        %858 = vperm.xlu0 %857, %v733
        %v859 = vpop.permute.xlu0 %858
        %861 = vset.pattern.permute.xlu0 1
        %862 = vperm.xlu0 %861, %v734
        %v863 = vpop.permute.xlu0 %862
        %865 = vset.pattern.permute.xlu0 1
        %866 = vperm.xlu0 %865, %v735
        %v867 = vpop.permute.xlu0 %866
        %v869 = vadd.f32 %v849, %v855
        %v870 = vadd.f32 %v850, %v859
        %v871 = vadd.f32 %v851, %v863
        %v872 = vadd.f32 %v852, %v867
        %s873 = scalar_lea.vmem %s236, 8 [#allocation5]
        %874 = vst.msk [vmem:[%s873] sm:$0xff] %vm756, %v869
        %875 = vst.msk [vmem:[%s873 + $0x10] sm:$0xff] %vm756, %v870
        %876 = vst.msk [vmem:[%s873 + $0x20] sm:$0xff] %vm756, %v871
        %877 = vst.msk [vmem:[%s873 + $0x30] sm:$0xff] %vm756, %v872
        %s878 = sand.u32 %s122, 1
        %s879 = scalar_lea.sflag [#allocation4], %s878
        %s880 = sand.u32 %s122, 1
        %s881 = smul.addr %s880, 64
        %s882 = scalar_lea.vmem [#allocation5], %s881
        // Predicated region
        $region37: #{tpu_custom_call.1} parent=31 // pred_check
          %p883 = pneg %p132
        $region38: #{tpu_custom_call.1} parent=31 // pred_check_branch
          %885 = sbr.rel (%p883) target = $region40
        $region39: #{tpu_custom_call.1} parent=31 // pred_region
          %s886 = smul.u32 4, %s25
          %888 = vsyncadd %s879, 0
          %s889 = smul.addr %s886, 2
          %s890 = smul.addr %s24, 8
          %s891 = sadd.s32 %s889, %s890
          %s892 = smul.addr %s891, 8
          %s893 = scalar_lea.hbm %s3, %s892
          %s894 = sshll.u32 %s882, 4
          %s895 = int_to_ptr.vmem [resolvable:$true] %s894
          %s896 = sshll.u32 %s893, 4
          %s897 = int_to_ptr.hbm [resolvable:$true] %s896
          %902 = dma.vmem_to_hbm [thread:$0]  %s895, 1024, %s897, %s879, 128, 128, 8
        $region40: #{tpu_custom_call.1} parent=31 // pred_fallthru
          _
      $region32: #{tpu_custom_call.1} parent=5 // pred_fallthru
        _
      %p903 = scmp.le.s32.totalorder 2, %s15
      // Predicated region
      $region41: #{tpu_custom_call.1} parent=5 // pred_check
        %p904 = pneg %p903
      $region42: #{tpu_custom_call.1} parent=5 // pred_check_branch
        %906 = sbr.rel (%p904) target = $region44
      $region43: #{tpu_custom_call.1} parent=5 // pred_region
        %s907 = ssub.s32 %s15, 2
        // Predicated region
        $region45: #{tpu_custom_call.1} parent=43 // pred_check
          %p908 = pneg %p138
        $region46: #{tpu_custom_call.1} parent=43 // pred_check_branch
          %910 = sbr.rel (%p908) target = $region48
        $region47: #{tpu_custom_call.1} parent=43 // pred_region
          %s911 = sand.u32 %s123, 1
          %s912 = scalar_lea.sflag [#allocation4], %s911
          %s913 = sand.u32 %s123, 1
          %s914 = smul.addr %s913, 64
          %s915 = scalar_lea.vmem [#allocation5], %s914
          %917 = dma.done %s912, 1024
        $region48: #{tpu_custom_call.1} parent=43 // pred_fallthru
          _
      $region44: #{tpu_custom_call.1} parent=5 // pred_fallthru
        _
    $region6: #{tpu_custom_call.1} parent=1 // loop_footer
      %s19 = sadd.s32 1, %s15
    $region7: #{tpu_custom_call.1} parent=1 // loop_footer_branch
      %14 = sbr.rel target = $region3
    $region8: #{tpu_custom_call.1} parent=1 // loop_exit
      _
    %918 = vsyncpa [#allocation3], 1
    %s919 = scalar_lea.sflag [#allocation3], 1
    %920 = vsyncpa %s919, 1
    %921 = vsyncpa [#allocation4], 1
    %s922 = scalar_lea.sflag [#allocation4], 1
    %923 = vsyncpa %s922, 1

</llo_original>
